<compile_context>
chip_gen: v7x
topology: tpu7x:2x2x1
jax: 0.10.0
libtpu: 0.0.40
codegen_flags: <defaults>
</compile_context>

<pallas_src>
import jax
import jax.numpy as jnp
from jax.experimental import pallas as pl
from jax.experimental.pallas import tpu as pltpu


def _round_up(a, b):
    return ((a + b - 1) // b) * b


def _sublane(dtype):
    # second-to-last block-dim alignment by dtype packing
    return {4: 8, 2: 16, 1: 32}[jnp.dtype(dtype).itemsize]


def _device_defaults():
    """Generation-specific tile defaults, scoped-VMEM limit and megacore hint."""
    try:
        kind = jax.devices()[0].device_kind.lower()
    except Exception:
        kind = ""
    if "v7" in kind:
        # 64 MiB VMEM / TC, 2 TCs: cap tiles ~1024, keep scoped VMEM <= ~48 MiB.
        return dict(tm=1024, tn=1024, tk=1024, vmem=48 * 1024 * 1024, two_tc=True)
    if "v6" in kind:
        return dict(tm=1024, tn=1024, tk=1024, vmem=100 * 1024 * 1024, two_tc=False)
    if "v5" in kind:
        return dict(tm=512, tn=512, tk=1024, vmem=64 * 1024 * 1024, two_tc=False)
    # unknown / fallback: conservative but still large, fits every generation's VMEM
    return dict(tm=512, tn=512, tk=1024, vmem=48 * 1024 * 1024, two_tc=False)


# ---------------------------------------------------------------------------
# Kernels. grid = (i over M tiles, j over N tiles, k over K tiles)
#   x_ref: (tm, tk)   wt_ref: (tk, tn)   [b_ref: (1, tn) f32]
#   o_ref: (tm, tn)   acc_ref: (tm, tn) f32 scratch
# ---------------------------------------------------------------------------

def _linear_bias_kernel(x_ref, wt_ref, b_ref, o_ref, acc_ref):
    part = jax.lax.dot_general(
        x_ref[...], wt_ref[...],
        dimension_numbers=(((1,), (0,)), ((), ())),
        preferred_element_type=jnp.float32)

    @pl.when(pl.program_id(2) == 0)
    def _():
        # Fuse accumulator init with the first K-step and the bias add.
        acc_ref[...] = part + b_ref[...].astype(jnp.float32)

    @pl.when(pl.program_id(2) != 0)
    def _():
        acc_ref[...] += part

    @pl.when(pl.program_id(2) == pl.num_programs(2) - 1)
    def _():
        o_ref[...] = acc_ref[...].astype(o_ref.dtype)


def _linear_kernel(x_ref, wt_ref, o_ref, acc_ref):
    part = jax.lax.dot_general(
        x_ref[...], wt_ref[...],
        dimension_numbers=(((1,), (0,)), ((), ())),
        preferred_element_type=jnp.float32)

    @pl.when(pl.program_id(2) == 0)
    def _():
        acc_ref[...] = part

    @pl.when(pl.program_id(2) != 0)
    def _():
        acc_ref[...] += part

    @pl.when(pl.program_id(2) == pl.num_programs(2) - 1)
    def _():
        o_ref[...] = acc_ref[...].astype(o_ref.dtype)


# ---------------------------------------------------------------------------
# Wrapper
# ---------------------------------------------------------------------------

def prepare_sparse_weight(weight, prune_mask=None, compute_dtype=jnp.bfloat16):
    """Fold the prune mask, cast, and transpose to [K, N] ONCE.

    The mask is static after pruning, so cache (or jit-constant-fold) the result across
    forward calls — the per-call N*K rebuild pass was the dominant cost at small M.
    """
    w_eff = weight if prune_mask is None else weight * prune_mask
    if compute_dtype is not None:
        w_eff = w_eff.astype(compute_dtype)
    return w_eff.T  # [K, N]; one offline relayout, off the hot path


def sparse_linear_forward(x, weight=None, bias=None, prune_mask=None, *,
                          weight_t=None, compute_dtype=jnp.bfloat16,
                          tm=None, tn=None, tk=None,
                          vmem_limit_bytes=None, weight_buffers=2):
    """SparseLinear forward: out = x @ (weight * prune_mask).T + bias.

    x: [..., K]; weight, prune_mask: [N, K]; bias: [N] or None.
    Alternatively pass weight_t=[K, N] (from prepare_sparse_weight) to reuse a cached,
    already mask-folded/cast/transposed weight. Returns [..., N] in x.dtype.
    compute_dtype=jnp.bfloat16 (default) runs the matmul on the bf16-native MXU with f32
    accumulation; compute_dtype=None keeps full f32.
    """
    orig_shape = x.shape
    out_dtype = x.dtype
    K = orig_shape[-1]

    d = _device_defaults()
    tm = d["tm"] if tm is None else tm
    tn = d["tn"] if tn is None else tn
    tk = d["tk"] if tk is None else tk
    vmem_limit_bytes = d["vmem"] if vmem_limit_bytes is None else vmem_limit_bytes

    if weight_t is None:
        assert weight is not None, "pass either weight (+prune_mask) or weight_t"
        weight_t = prepare_sparse_weight(weight, prune_mask, compute_dtype)
    Kw, N = weight_t.shape
    assert Kw == K, "weight must be [out_features, in_features] matching x's last dim"

    if compute_dtype is not None:
        x = x.astype(compute_dtype)
        weight_t = weight_t.astype(compute_dtype)  # no-op if already prepared

    x2d = x.reshape(-1, K)
    M = x2d.shape[0]

    # --- tile selection -----------------------------------------------------
    sub = max(_sublane(x2d.dtype), 8)
    tm_eff = min(tm, _round_up(M, sub))
    Mp = _round_up(M, tm_eff)

    # Lane-dense N (multiple of 128); pick the largest tn (multiple of 128, <= requested)
    # that divides Np exactly, so no extra padding / post-slice beyond 128-alignment.
    Np = _round_up(N, 128)
    tn_eff = 128
    t = 128
    while t <= min(tn, Np):
        if Np % t == 0:
            tn_eff = t
        t += 128
    # v7x: keep >= 2 tiles on the parallel axes so both TensorCores get work (decode case).
    if d["two_tc"] and (Mp // tm_eff) == 1 and (Np // tn_eff) == 1:
        half = Np // 2
        if half >= 128 and half % 128 == 0:
            tn_eff = half

    tk_eff = min(tk, _round_up(K, 128))
    Kp = _round_up(K, tk_eff)

    # --- padding (no-op at production transformer shapes) --------------------
    if (Mp, Kp) != (M, K):
        x2d = jnp.pad(x2d, ((0, Mp - M), (0, Kp - K)))
    if (Kp, Np) != (K, N):
        weight_t = jnp.pad(weight_t, ((0, Kp - K), (0, Np - N)))

    grid = (Mp // tm_eff, Np // tn_eff, Kp // tk_eff)

    x_spec = pl.BlockSpec((tm_eff, tk_eff), lambda i, j, k: (i, k))
    if weight_buffers != 2:
        # Deeper weight pipeline for small-M / weight-streaming shapes (sweep 2 vs 3).
        w_spec = pl.BlockSpec((tk_eff, tn_eff), lambda i, j, k: (k, j),
                              pipeline_mode=pl.Buffered(weight_buffers))
    else:
        w_spec = pl.BlockSpec((tk_eff, tn_eff), lambda i, j, k: (k, j))
    out_spec = pl.BlockSpec((tm_eff, tn_eff), lambda i, j, k: (i, j))

    itemsize = jnp.dtype(x2d.dtype).itemsize
    flops = 2 * Mp * Np * Kp
    bytes_accessed = (x2d.size * itemsize + weight_t.size * itemsize
                      + Mp * Np * jnp.dtype(out_dtype).itemsize)

    common = dict(
        out_shape=jax.ShapeDtypeStruct((Mp, Np), out_dtype),
        compiler_params=pltpu.CompilerParams(
            dimension_semantics=("parallel", "parallel", "arbitrary"),
            vmem_limit_bytes=vmem_limit_bytes),
        cost_estimate=pl.CostEstimate(flops=flops, transcendentals=0,
                                      bytes_accessed=bytes_accessed),
    )

    if bias is not None:
        bias2d = jnp.pad(bias.astype(jnp.float32), (0, Np - N)).reshape(1, Np)
        out = pl.pallas_call(
            _linear_bias_kernel,
            grid_spec=pltpu.PrefetchScalarGridSpec(
                num_scalar_prefetch=0, grid=grid,
                in_specs=[x_spec, w_spec,
                          pl.BlockSpec((1, tn_eff), lambda i, j, k: (0, j))],
                out_specs=out_spec,
                scratch_shapes=[pltpu.VMEM((tm_eff, tn_eff), jnp.float32)]),
            **common,
        )(x2d, weight_t, bias2d)
    else:
        out = pl.pallas_call(
            _linear_kernel,
            grid_spec=pltpu.PrefetchScalarGridSpec(
                num_scalar_prefetch=0, grid=grid,
                in_specs=[x_spec, w_spec],
                out_specs=out_spec,
                scratch_shapes=[pltpu.VMEM((tm_eff, tn_eff), jnp.float32)]),
            **common,
        )(x2d, weight_t)

    if (Mp, Np) != (M, N):
        out = out[:M, :N]
    return out.reshape(*orig_shape[:-1], N)


def make_wanda_prune_mask(weight, scaler_row, sparsity):
    """Row-wise 'wanda' mask: zero the `sparsity` fraction of smallest-metric entries per
    row (W_metric = |W| * sqrt(scaler_row)). Forward value of get_prune_mask()
    (wise_dim='row', unstructured)."""
    rows, cols = weight.shape
    metric = jnp.abs(weight) * jnp.sqrt(scaler_row)[None, :]
    k = int(cols * sparsity)
    mask = jnp.ones_like(weight)
    if k > 0:
        idx = jnp.argsort(metric, axis=-1, stable=True)[:, :k]
        row_idx = jnp.arange(rows)[:, None]
        mask = mask.at[row_idx, idx].set(0.0)
    return mask


if __name__ == "__main__":
    key = jax.random.PRNGKey(0)
    k_x, k_w, k_b, k_s = jax.random.split(key, 4)

    batch, seq = 2, 8
    in_features = 32    # SparseLinear.columns
    out_features = 64   # SparseLinear.rows

    x = jax.random.normal(k_x, (batch, seq, in_features), dtype=jnp.float32)
    weight = jax.random.normal(k_w, (out_features, in_features), dtype=jnp.float32) * 0.1
    bias = jax.random.normal(k_b, (out_features,), dtype=jnp.float32) * 0.1
    # scaler_row accumulated in add_batch (||inp||^2 / nsamples) — synthesize positives
    scaler_row = jax.random.uniform(k_s, (in_features,), dtype=jnp.float32) + 0.1

    prune_mask = make_wanda_prune_mask(weight, scaler_row, sparsity=0.5)
    ref = jnp.einsum("bsk,nk->bsn", x, weight * prune_mask) + bias

    # 1) learn_sparsity path, default bf16 MXU compute (f32 accumulation)
    out = sparse_linear_forward(x, weight, bias, prune_mask)
    out = jax.block_until_ready(out)
    assert out.shape == (batch, seq, out_features)
    assert jnp.allclose(out, ref, atol=1e-1, rtol=5e-2)

    # 2) exactness check with full f32 compute
    out_f32 = sparse_linear_forward(x, weight, bias, prune_mask, compute_dtype=None)
    out_f32 = jax.block_until_ready(out_f32)
    assert jnp.allclose(out_f32, ref, atol=1e-5, rtol=1e-5)

    # 3) plain dense forward, no bias, using the cached/prepared-weight path
    w_t = prepare_sparse_weight(weight, None)
    out_nb = sparse_linear_forward(x, weight_t=w_t, bias=None)
    out_nb = jax.block_until_ready(out_nb)
    ref_nb = jnp.einsum("bsk,nk->bsn", x, weight)
    assert out_nb.shape == (batch, seq, out_features)
    assert jnp.allclose(out_nb, ref_nb, atol=1e-1, rtol=5e-2)

    print("KERNEL_OK")
</pallas_src>

<mosaic_0001>
module attributes {stable_mosaic.version = 11 : i64} {
  func.func @_linear_bias_kernel(%arg0: i32, %arg1: i32, %arg2: i32, %arg3: memref<16x128xbf16, #tpu.memory_space<vmem>>, %arg4: memref<128x128xbf16, #tpu.memory_space<vmem>>, %arg5: memref<1x128xf32, #tpu.memory_space<vmem>>, %arg6: memref<16x128xf32, #tpu.memory_space<vmem>>, %arg7: memref<16x128xf32, #tpu.memory_space<vmem>>) attributes {dimension_semantics = [#tpu.dimension_semantics<parallel>, #tpu.dimension_semantics<parallel>, #tpu.dimension_semantics<arbitrary>], iteration_bounds = array<i64: 1, 1, 1>, scalar_prefetch = 0 : i64, scratch_operands = 1 : i64, tpu.core_type = #tpu.core_type<tc>, window_params = [{transform_indices = @transform_0, window_bounds = array<i64: 16, 128>}, {transform_indices = @transform_1, window_bounds = array<i64: 128, 128>}, {transform_indices = @transform_2, window_bounds = array<i64: 1, 128>}, {transform_indices = @transform_3, window_bounds = array<i64: 16, 128>}]} {
    %c0 = arith.constant 0 : index
    %c0_0 = arith.constant 0 : index
    %0 = vector.load %arg3[%c0, %c0_0] : memref<16x128xbf16, #tpu.memory_space<vmem>>, vector<16x128xbf16>
    %c0_1 = arith.constant 0 : index
    %c0_2 = arith.constant 0 : index
    %1 = vector.load %arg4[%c0_1, %c0_2] : memref<128x128xbf16, #tpu.memory_space<vmem>>, vector<128x128xbf16>
    %cst = arith.constant dense<0.000000e+00> : vector<16x128xf32>
    %2 = tpu.matmul %0, %1, %cst {dimension_numbers = #tpu.dot_dimension_numbers<[1], [0], [0], [1], [0, 0, 1, 1], [], []>} : vector<16x128xbf16>, vector<128x128xbf16>, vector<16x128xf32> -> vector<16x128xf32>
    %c0_i32 = arith.constant 0 : i32
    %3 = arith.cmpi eq, %arg2, %c0_i32 : i32
    %4 = arith.extui %3 : i1 to i32
    %c0_i32_3 = arith.constant 0 : i32
    %5 = arith.cmpi ne, %4, %c0_i32_3 : i32
    scf.if %5 {
      %c0_8 = arith.constant 0 : index
      %c0_9 = arith.constant 0 : index
      %12 = vector.load %arg5[%c0_8, %c0_9] : memref<1x128xf32, #tpu.memory_space<vmem>>, vector<1x128xf32>
      %13 = vector.broadcast %12 : vector<1x128xf32> to vector<16x128xf32>
      %14 = arith.addf %2, %13 : vector<16x128xf32>
      %c0_10 = arith.constant 0 : index
      %c0_11 = arith.constant 0 : index
      %15 = vector.load %arg7[%c0_10, %c0_11] : memref<16x128xf32, #tpu.memory_space<vmem>>, vector<16x128xf32>
      tpu.vector_store %arg7[%c0_10, %c0_11], %14 {strides = array<i32>} : memref<16x128xf32, #tpu.memory_space<vmem>>, vector<16x128xf32>,
    } else {
    }
    %c0_i32_4 = arith.constant 0 : i32
    %6 = arith.cmpi ne, %arg2, %c0_i32_4 : i32
    %7 = arith.extui %6 : i1 to i32
    %c0_i32_5 = arith.constant 0 : i32
    %8 = arith.cmpi ne, %7, %c0_i32_5 : i32
    scf.if %8 {
      %c0_8 = arith.constant 0 : index
      %c0_9 = arith.constant 0 : index
      %12 = vector.load %arg7[%c0_8, %c0_9] : memref<16x128xf32, #tpu.memory_space<vmem>>, vector<16x128xf32>
      %13 = arith.addf %12, %2 : vector<16x128xf32>
      %c0_10 = arith.constant 0 : index
      %c0_11 = arith.constant 0 : index
      %14 = vector.load %arg7[%c0_10, %c0_11] : memref<16x128xf32, #tpu.memory_space<vmem>>, vector<16x128xf32>
      tpu.vector_store %arg7[%c0_10, %c0_11], %13 {strides = array<i32>} : memref<16x128xf32, #tpu.memory_space<vmem>>, vector<16x128xf32>,
    } else {
    }
    %c0_i32_6 = arith.constant 0 : i32
    %9 = arith.cmpi eq, %arg2, %c0_i32_6 : i32
    %10 = arith.extui %9 : i1 to i32
    %c0_i32_7 = arith.constant 0 : i32
    %11 = arith.cmpi ne, %10, %c0_i32_7 : i32
    scf.if %11 {
      %c0_8 = arith.constant 0 : index
      %c0_9 = arith.constant 0 : index
      %12 = vector.load %arg7[%c0_8, %c0_9] : memref<16x128xf32, #tpu.memory_space<vmem>>, vector<16x128xf32>
      %c0_10 = arith.constant 0 : index
      %c0_11 = arith.constant 0 : index
      %13 = vector.load %arg6[%c0_10, %c0_11] : memref<16x128xf32, #tpu.memory_space<vmem>>, vector<16x128xf32>
      tpu.vector_store %arg6[%c0_10, %c0_11], %12 {strides = array<i32>} : memref<16x128xf32, #tpu.memory_space<vmem>>, vector<16x128xf32>,
    } else {
    }
    return
  }
  func.func @transform_0(%arg0: i32, %arg1: i32, %arg2: i32) -> (i32, i32) {
    %c0_i32 = arith.constant 0 : i32
    return %arg0, %arg2 : i32, i32
  }
  func.func @transform_1(%arg0: i32, %arg1: i32, %arg2: i32) -> (i32, i32) {
    %c0_i32 = arith.constant 0 : i32
    return %arg2, %arg1 : i32, i32
  }
  func.func @transform_2(%arg0: i32, %arg1: i32, %arg2: i32) -> (i32, i32) {
    %c0_i32 = arith.constant 0 : i32
    %c0_i32_0 = arith.constant 0 : i32
    return %c0_i32, %arg1 : i32, i32
  }
  func.func @transform_3(%arg0: i32, %arg1: i32, %arg2: i32) -> (i32, i32) {
    %c0_i32 = arith.constant 0 : i32
    return %arg0, %arg1 : i32, i32
  }
}

</mosaic_0001>

<llo_original>
// kernel: tpu_custom_call.1
$region0: #{tpu_custom_call.1}
  #allocation0 [shape = 'u32[]', space=smem, size = 0x4, offset = 0x4, fixed_abs, tag = 'smem constant byte address 0x4 - core index']
  #allocation1 [shape = 'u32[144,128]{1,0:T(1,128)}', space=vmem, size = 0x12000, scoped, tag = 'internal scratch']
  #allocation2 [shape = 'f32[16,128]{1,0:T(8,128)}', space=vmem, size = 0x2000, scoped, tag = 'scratch operand']
  %s0 = inlined_call_operand.hbm [shape: bf16[16,128], index: 0, kind: input, shape index: {}]
  %s1 = inlined_call_operand.hbm [shape: bf16[128,128], index: 1, kind: input, shape index: {}]
  %s2 = inlined_call_operand.vmem [shape: f32[1,128], index: 2, kind: input, shape index: {}]
  %s3 = inlined_call_operand.hbm [shape: f32[16,128], index: 3, kind: output, shape index: {}]
  %s4 = sld [smem:[#allocation0]]
  $region42: #{tpu_custom_call.1} parent=0
    _
  %s6 = ssub.s32 1, %s4
  %s7 = scalar_select 0, %s6, %s4
  $region1: #{tpu_custom_call.1} parent=0
    #allocation3 [shape = 'u8[4096]{0}', space=vmem, size = 0x1000, scoped, tag = 'input window, operand 0, single buffered']
    #allocation4 [shape = 's32[1]{0}', space=sflag, size = 0x4, scoped, tag = 'scoped memory for tpu_custom_call.1']
    #allocation5 [shape = 's32[1]{0}', space=sflag, size = 0x4, scoped, tag = 'scoped memory for tpu_custom_call.1']
    #allocation6 [shape = 'u8[32768]{0}', space=vmem, size = 0x8000, scoped, tag = 'input window, operand 1, single buffered']
    #allocation7 [shape = 's32[1]{0}', space=sflag, size = 0x4, scoped, tag = 'scoped memory for tpu_custom_call.1']
    #allocation8 [shape = 'u8[8192]{0}', space=vmem, size = 0x2000, scoped, tag = 'output window, operand 0, single buffered']
    %8 = vsyncpa [#allocation4], 0
    %9 = vsyncpa [#allocation7], 0
    %10 = vsyncpa [#allocation5], 0
    // Predicated region
    $region2: #{tpu_custom_call.1} parent=1 // pred_check
      _
    $region3: #{tpu_custom_call.1} parent=1 // pred_check_branch
      %12 = sbr.rel (0) target = $region5
    $region4: #{tpu_custom_call.1} parent=1 // pred_region
      %s14 = ssub.s32 128, 128
      %15 = vsyncadd [#allocation4], %s14
      %s16 = sshll.u32 [#allocation3], 4
      %s17 = int_to_ptr.vmem [resolvable:$true] %s16
      %22 = dma.hbm_to_vmem [thread:$0]  %s0, 128, %s17, [#allocation4], 64, 64, 4
    $region5: #{tpu_custom_call.1} parent=1 // pred_fallthru
      _
    // Predicated region
    $region6: #{tpu_custom_call.1} parent=1 // pred_check
      _
    $region7: #{tpu_custom_call.1} parent=1 // pred_check_branch
      %24 = sbr.rel (0) target = $region9
    $region8: #{tpu_custom_call.1} parent=1 // pred_region
      %s26 = ssub.s32 1024, 1024
      %27 = vsyncadd [#allocation7], %s26
      %s28 = sshll.u32 [#allocation6], 4
      %s29 = int_to_ptr.vmem [resolvable:$true] %s28
      %34 = dma.hbm_to_vmem [thread:$0]  %s1, 1024, %s29, [#allocation7], 64, 64, 4
    $region9: #{tpu_custom_call.1} parent=1 // pred_fallthru
      _
    // Predicated region
    $region10: #{tpu_custom_call.1} parent=1 // pred_check
      _
    $region11: #{tpu_custom_call.1} parent=1 // pred_check_branch
      %36 = sbr.rel (0) target = $region13
    $region12: #{tpu_custom_call.1} parent=1 // pred_region
      _
    $region13: #{tpu_custom_call.1} parent=1 // pred_fallthru
      _
    // Predicated region
    $region14: #{tpu_custom_call.1} parent=1 // pred_check
      _
    $region15: #{tpu_custom_call.1} parent=1 // pred_check_branch
      %38 = sbr.rel (0) target = $region17
    $region16: #{tpu_custom_call.1} parent=1 // pred_region
      %39 = dma.done [#allocation4], 128
    $region17: #{tpu_custom_call.1} parent=1 // pred_fallthru
      _
    // Predicated region
    $region18: #{tpu_custom_call.1} parent=1 // pred_check
      _
    $region19: #{tpu_custom_call.1} parent=1 // pred_check_branch
      %41 = sbr.rel (0) target = $region21
    $region20: #{tpu_custom_call.1} parent=1 // pred_region
      %42 = dma.done [#allocation7], 1024
    $region21: #{tpu_custom_call.1} parent=1 // pred_fallthru
      _
    %v44 = vld [vmem:[#allocation3] sm:$0xf]
    %v45 = vld [vmem:[#allocation3 + $0x4] sm:$0xf]
    %v46 = vld [vmem:[#allocation6] sm:$0xf]
    %v47 = vld [vmem:[#allocation6 + $0x4] sm:$0xf]
    %v48 = vld [vmem:[#allocation6 + $0x8] sm:$0xf]
    %v49 = vld [vmem:[#allocation6 + $0xc] sm:$0xf]
    %v50 = vld [vmem:[#allocation6 + $0x10] sm:$0xf]
    %v51 = vld [vmem:[#allocation6 + $0x14] sm:$0xf]
    %v52 = vld [vmem:[#allocation6 + $0x18] sm:$0xf]
    %v53 = vld [vmem:[#allocation6 + $0x1c] sm:$0xf]
    %v54 = vld [vmem:[#allocation6 + $0x20] sm:$0xf]
    %v55 = vld [vmem:[#allocation6 + $0x24] sm:$0xf]
    %v56 = vld [vmem:[#allocation6 + $0x28] sm:$0xf]
    %v57 = vld [vmem:[#allocation6 + $0x2c] sm:$0xf]
    %v58 = vld [vmem:[#allocation6 + $0x30] sm:$0xf]
    %v59 = vld [vmem:[#allocation6 + $0x34] sm:$0xf]
    %v60 = vld [vmem:[#allocation6 + $0x38] sm:$0xf]
    %v61 = vld [vmem:[#allocation6 + $0x3c] sm:$0xf]
    %v64 = vunpack.c.l.b16 %v44
    %v65 = vunpack.c.l.b16 %v45
    %v66 = vpack.c.b16 %v65, %v64
    %v84 = vunpack.c.l.b16 %v46
    %v85 = vunpack.c.l.b16 %v47
    %v86 = vunpack.c.l.b16 %v48
    %v87 = vunpack.c.l.b16 %v49
    %v88 = vunpack.c.l.b16 %v50
    %v89 = vunpack.c.l.b16 %v51
    %v90 = vunpack.c.l.b16 %v52
    %v91 = vunpack.c.l.b16 %v53
    %v92 = vunpack.c.l.b16 %v54
    %v93 = vunpack.c.l.b16 %v55
    %v94 = vunpack.c.l.b16 %v56
    %v95 = vunpack.c.l.b16 %v57
    %v96 = vunpack.c.l.b16 %v58
    %v97 = vunpack.c.l.b16 %v59
    %v98 = vunpack.c.l.b16 %v60
    %v99 = vunpack.c.l.b16 %v61
    %v100 = vpack.c.b16 %v85, %v84
    %v101 = vpack.c.b16 %v87, %v86
    %v102 = vpack.c.b16 %v89, %v88
    %v103 = vpack.c.b16 %v91, %v90
    %v104 = vpack.c.b16 %v93, %v92
    %v105 = vpack.c.b16 %v95, %v94
    %v106 = vpack.c.b16 %v97, %v96
    %v107 = vpack.c.b16 %v99, %v98
    %116 = vmatprep.subr.bf16.mxu0 0
    %117 = vmatpush1.bf16.msra.mxu0 %v100
    %118 = vmatprep.subr.bf16.mxu0 0
    %119 = vmatpush1.bf16.msra.mxu0 %v101
    %120 = vmatprep.subr.bf16.mxu0 0
    %121 = vmatpush1.bf16.msra.mxu0 %v102
    %122 = vmatprep.subr.bf16.mxu0 0
    %123 = vmatpush1.bf16.msra.mxu0 %v103
    %124 = vmatprep.subr.bf16.mxu0 0
    %125 = vmatpush1.bf16.msra.mxu0 %v104
    %126 = vmatprep.subr.bf16.mxu0 0
    %127 = vmatpush1.bf16.msra.mxu0 %v105
    %128 = vmatprep.subr.bf16.mxu0 0
    %129 = vmatpush1.bf16.msra.mxu0 %v106
    %130 = vmatprep.subr.bf16.mxu0 0
    %131 = vmatpush1.bf16.msra.mxu0 %v107
    %132 = vmatprep.subr.bf16.mxu0 0
    %133 = vmatpush1.bf16.msra.mxu0 0
    %134 = vmatprep.subr.bf16.mxu0 0
    %135 = vmatpush1.bf16.msra.mxu0 0
    %136 = vmatprep.subr.bf16.mxu0 0
    %137 = vmatpush1.bf16.msra.mxu0 0
    %138 = vmatprep.subr.bf16.mxu0 0
    %139 = vmatpush1.bf16.msra.mxu0 0
    %140 = vmatprep.subr.bf16.mxu0 0
    %141 = vmatpush1.bf16.msra.mxu0 0
    %142 = vmatprep.subr.bf16.mxu0 0
    %143 = vmatpush1.bf16.msra.mxu0 0
    %144 = vmatprep.subr.bf16.mxu0 0
    %145 = vmatpush1.bf16.msra.mxu0 0
    %146 = vmatprep.subr.bf16.mxu0 0
    %147 = vmatpush1.bf16.msra.mxu0 0
    %148 = vmatprep.mubr.bf16.mxu0 0
    %149 = vmatmul.mubr.bf16.gmra.mrb[0].mxu0 %v66
    %v150 = vpop.f32.mrb[0].mxu0
    %v151 = vadd.f32 0.0, %v150
    %v152 = vpop.f32.mrb[0].mxu0
    %v153 = vpop.f32.mrb[0].mxu0
    %v154 = vadd.f32 0.0, %v153
    %v155 = vpop.f32.mrb[0].mxu0
    %156 = vdwg.mxu0
    %p157 = scmp.eq.s32.totalorder 0, 0
    // Predicated region
    $region22: #{tpu_custom_call.1} parent=1 // pred_check
      %p158 = pneg %p157
    $region23: #{tpu_custom_call.1} parent=1 // pred_check_branch
      %160 = sbr.rel (%p158) target = $region25
    $region24: #{tpu_custom_call.1} parent=1 // pred_region
      %v161 = vld [vmem:[%s2] sm:$0x1]
      %v163 = vlaneseq
      %v164 = vshrl.u32 %v163, 7
      %v165 = vsub.s32 0, %v164
      %v166 = vrot.slane %v161, %v165
      %v168 = vadd.f32 %v151, %v166
      %v169 = vadd.f32 %v154, %v166
      %170 = vst [vmem:[#allocation2] sm:$0xff] %v168
      %171 = vst [vmem:[#allocation2 + $0x8] sm:$0xff] %v169
    $region25: #{tpu_custom_call.1} parent=1 // pred_fallthru
      _
    %p172 = scmp.ne.s32.totalorder 0, 0
    // Predicated region
    $region26: #{tpu_custom_call.1} parent=1 // pred_check
      %p173 = pneg %p172
    $region27: #{tpu_custom_call.1} parent=1 // pred_check_branch
      %175 = sbr.rel (%p173) target = $region29
    $region28: #{tpu_custom_call.1} parent=1 // pred_region
      %v176 = vld [vmem:[#allocation2] sm:$0xff]
      %v177 = vld [vmem:[#allocation2 + $0x8] sm:$0xff]
      %v178 = vadd.f32 %v176, %v151
      %v179 = vadd.f32 %v177, %v154
      %180 = vst [vmem:[#allocation2] sm:$0xff] %v178
      %181 = vst [vmem:[#allocation2 + $0x8] sm:$0xff] %v179
    $region29: #{tpu_custom_call.1} parent=1 // pred_fallthru
      _
    // Predicated region
    $region30: #{tpu_custom_call.1} parent=1 // pred_check
      %p182 = pneg %p157
    $region31: #{tpu_custom_call.1} parent=1 // pred_check_branch
      %184 = sbr.rel (%p182) target = $region33
    $region32: #{tpu_custom_call.1} parent=1 // pred_region
      %v185 = vld [vmem:[#allocation2] sm:$0xff]
      %v186 = vld [vmem:[#allocation2 + $0x8] sm:$0xff]
      %187 = vst [vmem:[#allocation8] sm:$0xff] %v185
      %188 = vst [vmem:[#allocation8 + $0x8] sm:$0xff] %v186
    $region33: #{tpu_custom_call.1} parent=1 // pred_fallthru
      _
    // Predicated region
    $region34: #{tpu_custom_call.1} parent=1 // pred_check
      _
    $region35: #{tpu_custom_call.1} parent=1 // pred_check_branch
      %190 = sbr.rel (0) target = $region37
    $region36: #{tpu_custom_call.1} parent=1 // pred_region
      %s192 = ssub.s32 256, 256
      %193 = vsyncadd [#allocation5], %s192
      %s194 = sshll.u32 [#allocation8], 4
      %s195 = int_to_ptr.vmem [resolvable:$true] %s194
      %200 = dma.vmem_to_hbm [thread:$0]  %s195, 256, %s3, [#allocation5], 128, 128, 8
    $region37: #{tpu_custom_call.1} parent=1 // pred_fallthru
      _
    // Predicated region
    $region38: #{tpu_custom_call.1} parent=1 // pred_check
      _
    $region39: #{tpu_custom_call.1} parent=1 // pred_check_branch
      %202 = sbr.rel (0) target = $region41
    $region40: #{tpu_custom_call.1} parent=1 // pred_region
      %203 = dma.done [#allocation5], 256
    $region41: #{tpu_custom_call.1} parent=1 // pred_fallthru
      _
    %204 = vsyncpa [#allocation4], 1
    %205 = vsyncpa [#allocation7], 1
    %206 = vsyncpa [#allocation5], 1

</llo_original>
